<compile_context>
chip_gen: v7x
topology: tpu7x:2x2x1
jax: 0.10.0
libtpu: 0.0.40
codegen_flags: <defaults>
</compile_context>

<pallas_src>
import jax
import jax.numpy as jnp
from jax.experimental import pallas as pl
from jax.experimental.pallas import tpu as pltpu

LANE = 128      # TPU lane width (last-dim alignment)
SUBLANE = 16    # bf16 sublane packing; batch tile is a multiple of this


def _round_up(x, m):
    return ((x + m - 1) // m) * m


# --------------------------------------------------------------------------- #
# Hardware queries (wrapped so the kernel still runs on any backend/version)
# --------------------------------------------------------------------------- #
def _vmem_capacity_bytes():
    try:
        return int(pltpu.get_tpu_info().vmem_capacity_bytes)
    except Exception:
        return 64 << 20   # conservative default (v7x per-TC VMEM)


def _bf16_epilogue_ok():
    """bf16 sigmoid only on parts with bf16 VPU/EUP (v6e / v7x)."""
    try:
        kind = jax.devices()[0].device_kind.lower()
    except Exception:
        return False
    return ("v6" in kind) or ("v7" in kind)


# --------------------------------------------------------------------------- #
# Kernel
# --------------------------------------------------------------------------- #
def _make_encoder_kernel(num_layers, bf16_act):
    """Returns kernel(x_ref, w0, b0, w1, b1, ..., o_ref).

    Fused MLP: all matmuls on the MXU with bf16 operands / f32 accumulation;
    bias add in f32; hidden sigmoid in bf16 (v6e/v7x) or f32 (v5e); final
    store lane-dense.
    """
    def kernel(*refs):
        x_ref, o_ref = refs[0], refs[-1]
        wb = refs[1:-1]
        h = x_ref[...].astype(jnp.bfloat16)               # in-kernel cast (no wrapper pass)
        for l in range(num_layers):
            w_ref, b_ref = wb[2 * l], wb[2 * l + 1]
            acc = jnp.dot(h, w_ref[...], preferred_element_type=jnp.float32)
            acc = acc + b_ref[...]                        # f32 bias add, (1, F) broadcast
            if l < num_layers - 1:
                if bf16_act:
                    h = jax.nn.sigmoid(acc.astype(jnp.bfloat16))   # bf16 EUP/VPU
                else:
                    h = jax.nn.sigmoid(acc).astype(jnp.bfloat16)   # f32 epilogue (v5e)
            else:
                o_ref[...] = acc.astype(o_ref.dtype)      # lane-dense store
    return kernel


def _vmem_estimate_bytes(tile_b, dims_pad, x_itemsize, out_itemsize):
    """VMEM footprint incl. Pallas' default 2-buffer allocation per operand."""
    w_bytes = 2 * sum(dims_pad[l] * dims_pad[l + 1]
                      for l in range(len(dims_pad) - 1)) * 2          # bf16, double-buffered
    b_bytes = 2 * sum(dims_pad[1:]) * 4                               # f32 biases, double-buffered
    io_bytes = (2 * tile_b * dims_pad[0] * x_itemsize
                + 2 * tile_b * dims_pad[-1] * out_itemsize)           # x / out blocks
    act_bytes = 3 * tile_b * max(dims_pad) * 4                        # live f32 activations
    return w_bytes + b_bytes + io_bytes + act_bytes


# --------------------------------------------------------------------------- #
# One-time parameter preparation (pad + cast; do NOT call per forward)
# --------------------------------------------------------------------------- #
def prepare_encoder_params(params):
    """params: list of (W, b) with W stored as (in_dim, out_dim) — the transpose
    of PyTorch's nn.Linear weight — so the kernel computes x @ W + b.
    Pads every feature dim up to a multiple of 128 lanes and casts W to bf16,
    b to f32, exactly once."""
    dims = [params[0][0].shape[0]] + [w.shape[1] for (w, _) in params]
    dims_pad = [_round_up(d, LANE) for d in dims]
    weights, biases = [], []
    for l, (w, b) in enumerate(params):
        di, do = dims_pad[l], dims_pad[l + 1]
        w_p = jnp.zeros((di, do), jnp.bfloat16)
        w_p = w_p.at[: w.shape[0], : w.shape[1]].set(w.astype(jnp.bfloat16))
        b_flat = b.reshape(-1)
        b_p = jnp.zeros((1, do), jnp.float32)
        b_p = b_p.at[0, : b_flat.shape[0]].set(b_flat.astype(jnp.float32))
        weights.append(w_p)
        biases.append(b_p)
    return {
        "weights": tuple(weights),
        "biases": tuple(biases),
        "dims": tuple(dims),
        "dims_pad": tuple(dims_pad),
        "latent_dim": int(params[-1][0].shape[1]),
    }


# --------------------------------------------------------------------------- #
# Forward
# --------------------------------------------------------------------------- #
def encoder_forward(x, prepared, *, tile_b=1024, bf16_act=None,
                    out_dtype=jnp.float32):
    """Run the fused encoder MLP.  Returns (result, None), mirroring
    Encoder.forward with variational=False.

    `prepared` must come from prepare_encoder_params (padded/cast once).
    `out_dtype` may be set to jnp.bfloat16 to halve the output HBM write when
    the caller tolerates bf16 latents (default f32 for parity)."""
    if bf16_act is None:
        bf16_act = _bf16_epilogue_ok()

    weights, biases = prepared["weights"], prepared["biases"]
    dims, dims_pad = prepared["dims"], prepared["dims_pad"]
    latent_dim = prepared["latent_dim"]
    num_layers = len(weights)

    B, d_in = x.shape
    assert d_in == dims[0], f"input feature dim {d_in} != model in_dim {dims[0]}"

    # Only the contraction (feature) dim of x ever needs padding; the batch dim
    # stays ragged (OOB rows in the last tile produce dropped writes).
    if d_in % LANE != 0:
        x_in = jnp.pad(x, ((0, 0), (0, dims_pad[0] - d_in)))
    else:
        x_in = x
    x_itemsize = jnp.dtype(x_in.dtype).itemsize
    out_itemsize = jnp.dtype(out_dtype).itemsize

    # ---- generation-aware VMEM budget -------------------------------------
    vmem_cap = _vmem_capacity_bytes()
    vmem_target = (3 * vmem_cap) // 4          # ~48 MiB on v7x, ~96 MiB on v5e/v6e

    # ---- batch tile: sublane-aligned, >=2 blocks when possible, VMEM-aware --
    B_ceil = _round_up(B, SUBLANE)
    TILE_B = min(_round_up(tile_b, SUBLANE), B_ceil)
    if B_ceil >= 2 * SUBLANE:
        # Guarantee >=2 batch blocks so v7x's second TensorCore isn't idle.
        TILE_B = min(TILE_B, _round_up(B_ceil // 2, SUBLANE))
    TILE_B = max(TILE_B, SUBLANE)
    while (TILE_B > SUBLANE and
           _vmem_estimate_bytes(TILE_B, dims_pad, x_itemsize, out_itemsize) > vmem_target):
        TILE_B = max(SUBLANE, _round_up(TILE_B // 2, SUBLANE))

    n_blocks = pl.cdiv(B, TILE_B)
    out_pad = dims_pad[-1]

    # ---- specs --------------------------------------------------------------
    flat_args = [x_in]
    in_specs = [pl.BlockSpec((TILE_B, dims_pad[0]), lambda i: (i, 0))]
    for l in range(num_layers):
        di, do = dims_pad[l], dims_pad[l + 1]
        flat_args += [weights[l], biases[l]]
        # Constant block index -> VMEM-resident across the whole grid.
        in_specs += [
            pl.BlockSpec((di, do), lambda i: (0, 0)),
            pl.BlockSpec((1, do), lambda i: (0, 0)),
        ]
    out_specs = pl.BlockSpec((TILE_B, out_pad), lambda i: (i, 0))

    # ---- advisory cost + VMEM limit ----------------------------------------
    flops = 2 * B * sum(dims_pad[l] * dims_pad[l + 1] for l in range(num_layers))
    transcendentals = B * sum(dims_pad[1:-1])
    bytes_accessed = (
        x_in.size * x_itemsize
        + sum(a.size * a.dtype.itemsize for a in flat_args[1:])
        + B * out_pad * out_itemsize
    )
    est = _vmem_estimate_bytes(TILE_B, dims_pad, x_itemsize, out_itemsize)
    vmem_limit = int(min(vmem_cap, max(2 * est, 32 << 20)))

    result_padded = pl.pallas_call(
        _make_encoder_kernel(num_layers, bf16_act),
        out_shape=jax.ShapeDtypeStruct((B, out_pad), out_dtype),
        grid=(n_blocks,),
        in_specs=in_specs,
        out_specs=out_specs,
        compiler_params=pltpu.CompilerParams(
            dimension_semantics=("parallel",),
            vmem_limit_bytes=vmem_limit,
        ),
        cost_estimate=pl.CostEstimate(
            flops=flops,
            transcendentals=transcendentals,
            bytes_accessed=bytes_accessed,
        ),
    )(*flat_args)

    # Strip lane padding only (batch was never padded); mirror (result, None).
    return result_padded[:, :latent_dim], None


# --------------------------------------------------------------------------- #
# Reference + init (mirrors Encoder.__init__ / forward for variational=False)
# --------------------------------------------------------------------------- #
def init_params(key, dimensions, latent_dim):
    """Deterministic synthetic init (PyTorch-Linear-style uniform fan-in bound).

    Mirrors Encoder.__init__ for variational=False EXACTLY, including the
    module's value-based "is this the last dim" check (a duplicate of
    dimensions[-1] earlier in the list stops construction early — reproduced
    intentionally)."""
    sizes = []
    for i, dim in enumerate(dimensions):
        if dim == dimensions[-1]:
            sizes.append((dim, latent_dim))
            break
        sizes.append((dim, dimensions[i + 1]))

    params = []
    for fan_in, fan_out in sizes:
        key, kw, kb = jax.random.split(key, 3)
        bound = 1.0 / (fan_in ** 0.5)
        # stored transposed relative to nn.Linear: (in_dim, out_dim)
        W = jax.random.uniform(kw, (fan_in, fan_out), jnp.float32, -bound, bound)
        b = jax.random.uniform(kb, (fan_out,), jnp.float32, -bound, bound)
        params.append((W, b))
    return params


def encoder_reference(x, params, *, bf16_act=False):
    """Plain-JAX reference with the same numerics as the kernel
    (bf16 matmul operands, f32 accumulation, generation-matched sigmoid)."""
    h = x
    n = len(params)
    for l, (w, b) in enumerate(params):
        acc = jnp.dot(h.astype(jnp.bfloat16), w.astype(jnp.bfloat16),
                      preferred_element_type=jnp.float32)
        acc = acc + b.reshape(1, -1).astype(jnp.float32)
        if l < n - 1:
            h = jax.nn.sigmoid(acc.astype(jnp.bfloat16)) if bf16_act else jax.nn.sigmoid(acc)
        else:
            h = acc
    return h


if __name__ == "__main__":
    # Small shapes consistent with the module: an MLP encoder.
    dimensions = [32, 64, 16]   # d0 -> d1 -> d2
    latent_dim = 8
    batch = 8

    key = jax.random.PRNGKey(0)
    key, kx = jax.random.split(key)
    x = jax.random.normal(kx, (batch, dimensions[0]), jnp.float32)

    params = init_params(key, dimensions, latent_dim)

    # Pad/cast weights ONCE, outside the jitted forward.
    prepared = prepare_encoder_params(params)
    bf16_act = _bf16_epilogue_ok()

    fwd = jax.jit(lambda xx: encoder_forward(xx, prepared, bf16_act=bf16_act))
    out, none_out = fwd(x)
    out = jax.block_until_ready(out)
    assert none_out is None
    assert out.shape == (batch, latent_dim)
    assert out.dtype == jnp.float32

    ref = encoder_reference(x, params, bf16_act=bf16_act)
    tol = 2e-2 if bf16_act else 1e-4
    assert jnp.allclose(out, ref, atol=tol, rtol=tol), "mismatch vs reference"

    print("KERNEL_OK")
</pallas_src>

<mosaic_0001>
module attributes {stable_mosaic.version = 11 : i64} {
  func.func @kernel(%arg0: i32, %arg1: memref<16x128xf32, #tpu.memory_space<vmem>>, %arg2: memref<128x128xbf16, #tpu.memory_space<vmem>>, %arg3: memref<1x128xf32, #tpu.memory_space<vmem>>, %arg4: memref<128x128xbf16, #tpu.memory_space<vmem>>, %arg5: memref<1x128xf32, #tpu.memory_space<vmem>>, %arg6: memref<128x128xbf16, #tpu.memory_space<vmem>>, %arg7: memref<1x128xf32, #tpu.memory_space<vmem>>, %arg8: memref<16x128xf32, #tpu.memory_space<vmem>>) attributes {dimension_semantics = [#tpu.dimension_semantics<parallel>], iteration_bounds = array<i64: 1>, scalar_prefetch = 0 : i64, scratch_operands = 0 : i64, tpu.core_type = #tpu.core_type<tc>, window_params = [{transform_indices = @transform_0, window_bounds = array<i64: 16, 128>}, {pipeline_mode = #tpu.pipeline_mode<synchronous>, transform_indices = @transform_1, window_bounds = array<i64: 128, 128>}, {pipeline_mode = #tpu.pipeline_mode<synchronous>, transform_indices = @transform_2, window_bounds = array<i64: 1, 128>}, {pipeline_mode = #tpu.pipeline_mode<synchronous>, transform_indices = @transform_3, window_bounds = array<i64: 128, 128>}, {pipeline_mode = #tpu.pipeline_mode<synchronous>, transform_indices = @transform_4, window_bounds = array<i64: 1, 128>}, {pipeline_mode = #tpu.pipeline_mode<synchronous>, transform_indices = @transform_5, window_bounds = array<i64: 128, 128>}, {pipeline_mode = #tpu.pipeline_mode<synchronous>, transform_indices = @transform_6, window_bounds = array<i64: 1, 128>}, {transform_indices = @transform_7, window_bounds = array<i64: 16, 128>}]} {
    %c0 = arith.constant 0 : index
    %c0_0 = arith.constant 0 : index
    %0 = vector.load %arg1[%c0, %c0_0] : memref<16x128xf32, #tpu.memory_space<vmem>>, vector<16x128xf32>
    %1 = arith.truncf %0 : vector<16x128xf32> to vector<16x128xbf16>
    %c0_1 = arith.constant 0 : index
    %c0_2 = arith.constant 0 : index
    %2 = vector.load %arg2[%c0_1, %c0_2] : memref<128x128xbf16, #tpu.memory_space<vmem>>, vector<128x128xbf16>
    %cst = arith.constant dense<0.000000e+00> : vector<16x128xf32>
    %3 = tpu.matmul %1, %2, %cst {dimension_numbers = #tpu.dot_dimension_numbers<[1], [0], [0], [1], [0, 0, 1, 1], [], []>} : vector<16x128xbf16>, vector<128x128xbf16>, vector<16x128xf32> -> vector<16x128xf32>
    %c0_3 = arith.constant 0 : index
    %c0_4 = arith.constant 0 : index
    %4 = vector.load %arg3[%c0_3, %c0_4] : memref<1x128xf32, #tpu.memory_space<vmem>>, vector<1x128xf32>
    %5 = vector.broadcast %4 : vector<1x128xf32> to vector<16x128xf32>
    %6 = arith.addf %3, %5 : vector<16x128xf32>
    %7 = arith.negf %6 : vector<16x128xf32>
    %8 = math.exp %7 : vector<16x128xf32>
    %cst_5 = arith.constant 1.000000e+00 : f32
    %9 = vector.broadcast %cst_5 : f32 to vector<16x128xf32>
    %10 = arith.addf %9, %8 : vector<16x128xf32>
    %11 = arith.divf %9, %10 : vector<16x128xf32>
    %12 = arith.truncf %11 : vector<16x128xf32> to vector<16x128xbf16>
    %c0_6 = arith.constant 0 : index
    %c0_7 = arith.constant 0 : index
    %13 = vector.load %arg4[%c0_6, %c0_7] : memref<128x128xbf16, #tpu.memory_space<vmem>>, vector<128x128xbf16>
    %cst_8 = arith.constant dense<0.000000e+00> : vector<16x128xf32>
    %14 = tpu.matmul %12, %13, %cst_8 {dimension_numbers = #tpu.dot_dimension_numbers<[1], [0], [0], [1], [0, 0, 1, 1], [], []>} : vector<16x128xbf16>, vector<128x128xbf16>, vector<16x128xf32> -> vector<16x128xf32>
    %c0_9 = arith.constant 0 : index
    %c0_10 = arith.constant 0 : index
    %15 = vector.load %arg5[%c0_9, %c0_10] : memref<1x128xf32, #tpu.memory_space<vmem>>, vector<1x128xf32>
    %16 = vector.broadcast %15 : vector<1x128xf32> to vector<16x128xf32>
    %17 = arith.addf %14, %16 : vector<16x128xf32>
    %18 = arith.negf %17 : vector<16x128xf32>
    %19 = math.exp %18 : vector<16x128xf32>
    %cst_11 = arith.constant 1.000000e+00 : f32
    %20 = vector.broadcast %cst_11 : f32 to vector<16x128xf32>
    %21 = arith.addf %20, %19 : vector<16x128xf32>
    %22 = arith.divf %20, %21 : vector<16x128xf32>
    %23 = arith.truncf %22 : vector<16x128xf32> to vector<16x128xbf16>
    %c0_12 = arith.constant 0 : index
    %c0_13 = arith.constant 0 : index
    %24 = vector.load %arg6[%c0_12, %c0_13] : memref<128x128xbf16, #tpu.memory_space<vmem>>, vector<128x128xbf16>
    %cst_14 = arith.constant dense<0.000000e+00> : vector<16x128xf32>
    %25 = tpu.matmul %23, %24, %cst_14 {dimension_numbers = #tpu.dot_dimension_numbers<[1], [0], [0], [1], [0, 0, 1, 1], [], []>} : vector<16x128xbf16>, vector<128x128xbf16>, vector<16x128xf32> -> vector<16x128xf32>
    %c0_15 = arith.constant 0 : index
    %c0_16 = arith.constant 0 : index
    %26 = vector.load %arg7[%c0_15, %c0_16] : memref<1x128xf32, #tpu.memory_space<vmem>>, vector<1x128xf32>
    %27 = vector.broadcast %26 : vector<1x128xf32> to vector<16x128xf32>
    %28 = arith.addf %25, %27 : vector<16x128xf32>
    %c0_17 = arith.constant 0 : index
    %c0_18 = arith.constant 0 : index
    %29 = vector.load %arg8[%c0_17, %c0_18] : memref<16x128xf32, #tpu.memory_space<vmem>>, vector<16x128xf32>
    tpu.vector_store %arg8[%c0_17, %c0_18], %28 {strides = array<i32>} : memref<16x128xf32, #tpu.memory_space<vmem>>, vector<16x128xf32>,
    return
  }
  func.func @transform_0(%arg0: i32) -> (i32, i32) {
    %c0_i32 = arith.constant 0 : i32
    %c0_i32_0 = arith.constant 0 : i32
    return %arg0, %c0_i32 : i32, i32
  }
  func.func @transform_1(%arg0: i32) -> (i32, i32) {
    %c0_i32 = arith.constant 0 : i32
    %c0_i32_0 = arith.constant 0 : i32
    %c0_i32_1 = arith.constant 0 : i32
    return %c0_i32, %c0_i32_0 : i32, i32
  }
  func.func @transform_2(%arg0: i32) -> (i32, i32) {
    %c0_i32 = arith.constant 0 : i32
    %c0_i32_0 = arith.constant 0 : i32
    %c0_i32_1 = arith.constant 0 : i32
    return %c0_i32, %c0_i32_0 : i32, i32
  }
  func.func @transform_3(%arg0: i32) -> (i32, i32) {
    %c0_i32 = arith.constant 0 : i32
    %c0_i32_0 = arith.constant 0 : i32
    %c0_i32_1 = arith.constant 0 : i32
    return %c0_i32, %c0_i32_0 : i32, i32
  }
  func.func @transform_4(%arg0: i32) -> (i32, i32) {
    %c0_i32 = arith.constant 0 : i32
    %c0_i32_0 = arith.constant 0 : i32
    %c0_i32_1 = arith.constant 0 : i32
    return %c0_i32, %c0_i32_0 : i32, i32
  }
  func.func @transform_5(%arg0: i32) -> (i32, i32) {
    %c0_i32 = arith.constant 0 : i32
    %c0_i32_0 = arith.constant 0 : i32
    %c0_i32_1 = arith.constant 0 : i32
    return %c0_i32, %c0_i32_0 : i32, i32
  }
  func.func @transform_6(%arg0: i32) -> (i32, i32) {
    %c0_i32 = arith.constant 0 : i32
    %c0_i32_0 = arith.constant 0 : i32
    %c0_i32_1 = arith.constant 0 : i32
    return %c0_i32, %c0_i32_0 : i32, i32
  }
  func.func @transform_7(%arg0: i32) -> (i32, i32) {
    %c0_i32 = arith.constant 0 : i32
    %c0_i32_0 = arith.constant 0 : i32
    return %arg0, %c0_i32 : i32, i32
  }
}

</mosaic_0001>

<llo_original>
// kernel: _lambda_.1
$region0: #{_lambda_.1}
  #allocation0 [shape = 'u32[]', space=smem, size = 0x4, offset = 0x4, fixed_abs, tag = 'smem constant byte address 0x4 - core index']
  #allocation1 [shape = 'u32[144,128]{1,0:T(1,128)}', space=vmem, size = 0x12000, scoped, tag = 'internal scratch']
  %s0 = inlined_call_operand.vmem [shape: f32[8,128], index: 0, kind: input, shape index: {}]
  %s1 = inlined_call_operand.hbm [shape: bf16[128,128], index: 1, kind: input, shape index: {}]
  %s2 = inlined_call_operand.vmem [shape: f32[1,128], index: 2, kind: input, shape index: {}]
  %s3 = inlined_call_operand.hbm [shape: bf16[128,128], index: 3, kind: input, shape index: {}]
  %s4 = inlined_call_operand.vmem [shape: f32[1,128], index: 4, kind: input, shape index: {}]
  %s5 = inlined_call_operand.hbm [shape: bf16[128,128], index: 5, kind: input, shape index: {}]
  %s6 = inlined_call_operand.vmem [shape: f32[1,128], index: 6, kind: input, shape index: {}]
  %s7 = inlined_call_operand.hbm [shape: f32[8,128], index: 7, kind: output, shape index: {}]
  %s8 = sld [smem:[#allocation0]]
  $region50: #{_lambda_.1} parent=0
    _
  %s10 = ssub.s32 1, %s8
  %s11 = scalar_select 0, %s10, %s8
  $region1: #{_lambda_.1} parent=0
    #allocation2 [shape = 'u8[32768]{0}', space=vmem, size = 0x8000, scoped, tag = 'input window, operand 1, single buffered']
    #allocation3 [shape = 's32[1]{0}', space=sflag, size = 0x4, scoped, tag = 'scoped memory for _lambda_.1']
    #allocation4 [shape = 's32[1]{0}', space=sflag, size = 0x4, scoped, tag = 'scoped memory for _lambda_.1']
    #allocation5 [shape = 'u8[32768]{0}', space=vmem, size = 0x8000, scoped, tag = 'input window, operand 3, single buffered']
    #allocation6 [shape = 's32[1]{0}', space=sflag, size = 0x4, scoped, tag = 'scoped memory for _lambda_.1']
    #allocation7 [shape = 'u8[32768]{0}', space=vmem, size = 0x8000, scoped, tag = 'input window, operand 5, single buffered']
    #allocation8 [shape = 'u8[8192]{0}', space=vmem, size = 0x2000, scoped, tag = 'output window, operand 0, single buffered']
    %12 = vsyncpa [#allocation3], 0
    %13 = vsyncpa [#allocation6], 0
    %14 = vsyncpa [#allocation4], 0
    // Predicated region
    $region2: #{_lambda_.1} parent=1 // pred_check
      _
    $region3: #{_lambda_.1} parent=1 // pred_check_branch
      %16 = sbr.rel (0) target = $region5
    $region4: #{_lambda_.1} parent=1 // pred_region
      _
    $region5: #{_lambda_.1} parent=1 // pred_fallthru
      _
    // Predicated region
    $region6: #{_lambda_.1} parent=1 // pred_check
      _
    $region7: #{_lambda_.1} parent=1 // pred_check_branch
      %18 = sbr.rel (0) target = $region9
    $region8: #{_lambda_.1} parent=1 // pred_region
      %s20 = ssub.s32 1024, 1024
      %21 = vsyncadd [#allocation3], %s20
      %s22 = sshll.u32 [#allocation2], 4
      %s23 = int_to_ptr.vmem [resolvable:$true] %s22
      %28 = dma.hbm_to_vmem [thread:$0]  %s1, 1024, %s23, [#allocation3], 64, 64, 4
    $region9: #{_lambda_.1} parent=1 // pred_fallthru
      _
    // Predicated region
    $region10: #{_lambda_.1} parent=1 // pred_check
      _
    $region11: #{_lambda_.1} parent=1 // pred_check_branch
      %30 = sbr.rel (0) target = $region13
    $region12: #{_lambda_.1} parent=1 // pred_region
      _
    $region13: #{_lambda_.1} parent=1 // pred_fallthru
      _
    // Predicated region
    $region14: #{_lambda_.1} parent=1 // pred_check
      _
    $region15: #{_lambda_.1} parent=1 // pred_check_branch
      %32 = sbr.rel (0) target = $region17
    $region16: #{_lambda_.1} parent=1 // pred_region
      %s34 = ssub.s32 1024, 1024
      %35 = vsyncadd [#allocation6], %s34
      %s36 = sshll.u32 [#allocation5], 4
      %s37 = int_to_ptr.vmem [resolvable:$true] %s36
      %42 = dma.hbm_to_vmem [thread:$0]  %s3, 1024, %s37, [#allocation6], 64, 64, 4
    $region17: #{_lambda_.1} parent=1 // pred_fallthru
      _
    // Predicated region
    $region18: #{_lambda_.1} parent=1 // pred_check
      _
    $region19: #{_lambda_.1} parent=1 // pred_check_branch
      %44 = sbr.rel (0) target = $region21
    $region20: #{_lambda_.1} parent=1 // pred_region
      _
    $region21: #{_lambda_.1} parent=1 // pred_fallthru
      _
    // Predicated region
    $region22: #{_lambda_.1} parent=1 // pred_check
      _
    $region23: #{_lambda_.1} parent=1 // pred_check_branch
      %46 = sbr.rel (0) target = $region25
    $region24: #{_lambda_.1} parent=1 // pred_region
      %s48 = ssub.s32 1024, 1024
      %49 = vsyncadd [#allocation6], %s48
      %s50 = sshll.u32 [#allocation7], 4
      %s51 = int_to_ptr.vmem [resolvable:$true] %s50
      %56 = dma.hbm_to_vmem [thread:$0]  %s5, 1024, %s51, [#allocation6], 64, 64, 4
    $region25: #{_lambda_.1} parent=1 // pred_fallthru
      _
    // Predicated region
    $region26: #{_lambda_.1} parent=1 // pred_check
      _
    $region27: #{_lambda_.1} parent=1 // pred_check_branch
      %58 = sbr.rel (0) target = $region29
    $region28: #{_lambda_.1} parent=1 // pred_region
      _
    $region29: #{_lambda_.1} parent=1 // pred_fallthru
      _
    // Predicated region
    $region30: #{_lambda_.1} parent=1 // pred_check
      _
    $region31: #{_lambda_.1} parent=1 // pred_check_branch
      %60 = sbr.rel (0) target = $region33
    $region32: #{_lambda_.1} parent=1 // pred_region
      %61 = dma.done [#allocation3], 1024
    $region33: #{_lambda_.1} parent=1 // pred_fallthru
      _
    // Predicated region
    $region34: #{_lambda_.1} parent=1 // pred_check
      _
    $region35: #{_lambda_.1} parent=1 // pred_check_branch
      %63 = sbr.rel (0) target = $region37
    $region36: #{_lambda_.1} parent=1 // pred_region
      %64 = dma.done [#allocation6], 1024
    $region37: #{_lambda_.1} parent=1 // pred_fallthru
      _
    // Predicated region
    $region38: #{_lambda_.1} parent=1 // pred_check
      _
    $region39: #{_lambda_.1} parent=1 // pred_check_branch
      %66 = sbr.rel (0) target = $region41
    $region40: #{_lambda_.1} parent=1 // pred_region
      %67 = dma.done [#allocation6], 1024
    $region41: #{_lambda_.1} parent=1 // pred_fallthru
      _
    %v69 = vld [vmem:[%s0] sm:$0xff]
    %v70 = vld [vmem:[%s0 + $0x8] sm:$0xff]
    %v71 = vpack.c.bf16 %v70, %v69
    %v72 = vld [vmem:[#allocation2] sm:$0xf]
    %v73 = vld [vmem:[#allocation2 + $0x4] sm:$0xf]
    %v74 = vld [vmem:[#allocation2 + $0x8] sm:$0xf]
    %v75 = vld [vmem:[#allocation2 + $0xc] sm:$0xf]
    %v76 = vld [vmem:[#allocation2 + $0x10] sm:$0xf]
    %v77 = vld [vmem:[#allocation2 + $0x14] sm:$0xf]
    %v78 = vld [vmem:[#allocation2 + $0x18] sm:$0xf]
    %v79 = vld [vmem:[#allocation2 + $0x1c] sm:$0xf]
    %v80 = vld [vmem:[#allocation2 + $0x20] sm:$0xf]
    %v81 = vld [vmem:[#allocation2 + $0x24] sm:$0xf]
    %v82 = vld [vmem:[#allocation2 + $0x28] sm:$0xf]
    %v83 = vld [vmem:[#allocation2 + $0x2c] sm:$0xf]
    %v84 = vld [vmem:[#allocation2 + $0x30] sm:$0xf]
    %v85 = vld [vmem:[#allocation2 + $0x34] sm:$0xf]
    %v86 = vld [vmem:[#allocation2 + $0x38] sm:$0xf]
    %v87 = vld [vmem:[#allocation2 + $0x3c] sm:$0xf]
    %v88 = vld [vmem:[%s2] sm:$0x1]
    %v90 = vlaneseq
    %v91 = vshrl.u32 %v90, 7
    %v92 = vsub.s32 0, %v91
    %v93 = vrot.slane %v88, %v92
    %v111 = vunpack.c.l.b16 %v72
    %v112 = vunpack.c.l.b16 %v73
    %v113 = vunpack.c.l.b16 %v74
    %v114 = vunpack.c.l.b16 %v75
    %v115 = vunpack.c.l.b16 %v76
    %v116 = vunpack.c.l.b16 %v77
    %v117 = vunpack.c.l.b16 %v78
    %v118 = vunpack.c.l.b16 %v79
    %v119 = vunpack.c.l.b16 %v80
    %v120 = vunpack.c.l.b16 %v81
    %v121 = vunpack.c.l.b16 %v82
    %v122 = vunpack.c.l.b16 %v83
    %v123 = vunpack.c.l.b16 %v84
    %v124 = vunpack.c.l.b16 %v85
    %v125 = vunpack.c.l.b16 %v86
    %v126 = vunpack.c.l.b16 %v87
    %v127 = vpack.c.b16 %v112, %v111
    %v128 = vpack.c.b16 %v114, %v113
    %v129 = vpack.c.b16 %v116, %v115
    %v130 = vpack.c.b16 %v118, %v117
    %v131 = vpack.c.b16 %v120, %v119
    %v132 = vpack.c.b16 %v122, %v121
    %v133 = vpack.c.b16 %v124, %v123
    %v134 = vpack.c.b16 %v126, %v125
    %143 = vmatprep.subr.bf16.mxu0 0
    %144 = vmatpush1.bf16.msra.mxu0 %v127
    %145 = vmatprep.subr.bf16.mxu0 0
    %146 = vmatpush1.bf16.msra.mxu0 %v128
    %147 = vmatprep.subr.bf16.mxu0 0
    %148 = vmatpush1.bf16.msra.mxu0 %v129
    %149 = vmatprep.subr.bf16.mxu0 0
    %150 = vmatpush1.bf16.msra.mxu0 %v130
    %151 = vmatprep.subr.bf16.mxu0 0
    %152 = vmatpush1.bf16.msra.mxu0 %v131
    %153 = vmatprep.subr.bf16.mxu0 0
    %154 = vmatpush1.bf16.msra.mxu0 %v132
    %155 = vmatprep.subr.bf16.mxu0 0
    %156 = vmatpush1.bf16.msra.mxu0 %v133
    %157 = vmatprep.subr.bf16.mxu0 0
    %158 = vmatpush1.bf16.msra.mxu0 %v134
    %159 = vmatprep.subr.bf16.mxu0 0
    %160 = vmatpush1.bf16.msra.mxu0 0
    %161 = vmatprep.subr.bf16.mxu0 0
    %162 = vmatpush1.bf16.msra.mxu0 0
    %163 = vmatprep.subr.bf16.mxu0 0
    %164 = vmatpush1.bf16.msra.mxu0 0
    %165 = vmatprep.subr.bf16.mxu0 0
    %166 = vmatpush1.bf16.msra.mxu0 0
    %167 = vmatprep.subr.bf16.mxu0 0
    %168 = vmatpush1.bf16.msra.mxu0 0
    %169 = vmatprep.subr.bf16.mxu0 0
    %170 = vmatpush1.bf16.msra.mxu0 0
    %171 = vmatprep.subr.bf16.mxu0 0
    %172 = vmatpush1.bf16.msra.mxu0 0
    %173 = vmatprep.subr.bf16.mxu0 0
    %174 = vmatpush1.bf16.msra.mxu0 0
    %175 = vmatprep.mubr.bf16.mxu0 0
    %176 = vmatmul.mubr.bf16.gmra.mrb[0].mxu0 %v71
    %v177 = vpop.f32.mrb[0].mxu0
    %v178 = vadd.f32 %v93, %v177
    %v179 = vpop.f32.mrb[0].mxu0
    %v180 = vpop.f32.mrb[0].mxu0
    %v181 = vadd.f32 %v93, %v180
    %v182 = vpop.f32.mrb[0].mxu0
    %183 = vdwg.mxu0
    %v184 = vxor.u32 %v178, 2147483648
    %v185 = vxor.u32 %v181, 2147483648
    %v186 = vmul.f32 %v184, 1.442695
    %v187 = vpow.pop %v186
    %v188 = vmul.f32 %v185, 1.442695
    %v189 = vpow.pop %v188
    %v190 = vadd.f32 %v187, 1.0
    %v191 = vadd.f32 %v189, 1.0
    %v192 = vrcp.pop %v190
    %v193 = vmul.f32 1.0, %v192
    %v194 = vrcp.pop %v191
    %v195 = vmul.f32 1.0, %v194
    %v196 = vpack.c.bf16 %v195, %v193
    %v197 = vld [vmem:[#allocation5] sm:$0xf]
    %v198 = vld [vmem:[#allocation5 + $0x4] sm:$0xf]
    %v199 = vld [vmem:[#allocation5 + $0x8] sm:$0xf]
    %v200 = vld [vmem:[#allocation5 + $0xc] sm:$0xf]
    %v201 = vld [vmem:[#allocation5 + $0x10] sm:$0xf]
    %v202 = vld [vmem:[#allocation5 + $0x14] sm:$0xf]
    %v203 = vld [vmem:[#allocation5 + $0x18] sm:$0xf]
    %v204 = vld [vmem:[#allocation5 + $0x1c] sm:$0xf]
    %v205 = vld [vmem:[#allocation5 + $0x20] sm:$0xf]
    %v206 = vld [vmem:[#allocation5 + $0x24] sm:$0xf]
    %v207 = vld [vmem:[#allocation5 + $0x28] sm:$0xf]
    %v208 = vld [vmem:[#allocation5 + $0x2c] sm:$0xf]
    %v209 = vld [vmem:[#allocation5 + $0x30] sm:$0xf]
    %v210 = vld [vmem:[#allocation5 + $0x34] sm:$0xf]
    %v211 = vld [vmem:[#allocation5 + $0x38] sm:$0xf]
    %v212 = vld [vmem:[#allocation5 + $0x3c] sm:$0xf]
    %v213 = vld [vmem:[%s4] sm:$0x1]
    %v215 = vlaneseq
    %v216 = vshrl.u32 %v215, 7
    %v217 = vsub.s32 0, %v216
    %v218 = vrot.slane %v213, %v217
    %v236 = vunpack.c.l.b16 %v197
    %v237 = vunpack.c.l.b16 %v198
    %v238 = vunpack.c.l.b16 %v199
    %v239 = vunpack.c.l.b16 %v200
    %v240 = vunpack.c.l.b16 %v201
    %v241 = vunpack.c.l.b16 %v202
    %v242 = vunpack.c.l.b16 %v203
    %v243 = vunpack.c.l.b16 %v204
    %v244 = vunpack.c.l.b16 %v205
    %v245 = vunpack.c.l.b16 %v206
    %v246 = vunpack.c.l.b16 %v207
    %v247 = vunpack.c.l.b16 %v208
    %v248 = vunpack.c.l.b16 %v209
    %v249 = vunpack.c.l.b16 %v210
    %v250 = vunpack.c.l.b16 %v211
    %v251 = vunpack.c.l.b16 %v212
    %v252 = vpack.c.b16 %v237, %v236
    %v253 = vpack.c.b16 %v239, %v238
    %v254 = vpack.c.b16 %v241, %v240
    %v255 = vpack.c.b16 %v243, %v242
    %v256 = vpack.c.b16 %v245, %v244
    %v257 = vpack.c.b16 %v247, %v246
    %v258 = vpack.c.b16 %v249, %v248
    %v259 = vpack.c.b16 %v251, %v250
    %268 = vmatprep.subr.bf16.mxu0 0
    %269 = vmatpush1.bf16.msra.mxu0 %v252
    %270 = vmatprep.subr.bf16.mxu0 0
    %271 = vmatpush1.bf16.msra.mxu0 %v253
    %272 = vmatprep.subr.bf16.mxu0 0
    %273 = vmatpush1.bf16.msra.mxu0 %v254
    %274 = vmatprep.subr.bf16.mxu0 0
    %275 = vmatpush1.bf16.msra.mxu0 %v255
    %276 = vmatprep.subr.bf16.mxu0 0
    %277 = vmatpush1.bf16.msra.mxu0 %v256
    %278 = vmatprep.subr.bf16.mxu0 0
    %279 = vmatpush1.bf16.msra.mxu0 %v257
    %280 = vmatprep.subr.bf16.mxu0 0
    %281 = vmatpush1.bf16.msra.mxu0 %v258
    %282 = vmatprep.subr.bf16.mxu0 0
    %283 = vmatpush1.bf16.msra.mxu0 %v259
    %284 = vmatprep.subr.bf16.mxu0 0
    %285 = vmatpush1.bf16.msra.mxu0 0
    %286 = vmatprep.subr.bf16.mxu0 0
    %287 = vmatpush1.bf16.msra.mxu0 0
    %288 = vmatprep.subr.bf16.mxu0 0
    %289 = vmatpush1.bf16.msra.mxu0 0
    %290 = vmatprep.subr.bf16.mxu0 0
    %291 = vmatpush1.bf16.msra.mxu0 0
    %292 = vmatprep.subr.bf16.mxu0 0
    %293 = vmatpush1.bf16.msra.mxu0 0
    %294 = vmatprep.subr.bf16.mxu0 0
    %295 = vmatpush1.bf16.msra.mxu0 0
    %296 = vmatprep.subr.bf16.mxu0 0
    %297 = vmatpush1.bf16.msra.mxu0 0
    %298 = vmatprep.subr.bf16.mxu0 0
    %299 = vmatpush1.bf16.msra.mxu0 0
    %300 = vmatprep.mubr.bf16.mxu0 0
    %301 = vmatmul.mubr.bf16.gmra.mrb[0].mxu0 %v196
    %v302 = vpop.f32.mrb[0].mxu0
    %v303 = vadd.f32 %v218, %v302
    %v304 = vpop.f32.mrb[0].mxu0
    %v305 = vpop.f32.mrb[0].mxu0
    %v306 = vadd.f32 %v218, %v305
    %v307 = vpop.f32.mrb[0].mxu0
    %308 = vdwg.mxu0
    %v309 = vxor.u32 %v303, 2147483648
    %v310 = vxor.u32 %v306, 2147483648
    %v311 = vmul.f32 %v309, 1.442695
    %v312 = vpow.pop %v311
    %v313 = vmul.f32 %v310, 1.442695
    %v314 = vpow.pop %v313
    %v315 = vadd.f32 %v312, 1.0
    %v316 = vadd.f32 %v314, 1.0
    %v317 = vrcp.pop %v315
    %v318 = vmul.f32 1.0, %v317
    %v319 = vrcp.pop %v316
    %v320 = vmul.f32 1.0, %v319
    %v321 = vpack.c.bf16 %v320, %v318
    %v322 = vld [vmem:[#allocation7] sm:$0xf]
    %v323 = vld [vmem:[#allocation7 + $0x4] sm:$0xf]
    %v324 = vld [vmem:[#allocation7 + $0x8] sm:$0xf]
    %v325 = vld [vmem:[#allocation7 + $0xc] sm:$0xf]
    %v326 = vld [vmem:[#allocation7 + $0x10] sm:$0xf]
    %v327 = vld [vmem:[#allocation7 + $0x14] sm:$0xf]
    %v328 = vld [vmem:[#allocation7 + $0x18] sm:$0xf]
    %v329 = vld [vmem:[#allocation7 + $0x1c] sm:$0xf]
    %v330 = vld [vmem:[#allocation7 + $0x20] sm:$0xf]
    %v331 = vld [vmem:[#allocation7 + $0x24] sm:$0xf]
    %v332 = vld [vmem:[#allocation7 + $0x28] sm:$0xf]
    %v333 = vld [vmem:[#allocation7 + $0x2c] sm:$0xf]
    %v334 = vld [vmem:[#allocation7 + $0x30] sm:$0xf]
    %v335 = vld [vmem:[#allocation7 + $0x34] sm:$0xf]
    %v336 = vld [vmem:[#allocation7 + $0x38] sm:$0xf]
    %v337 = vld [vmem:[#allocation7 + $0x3c] sm:$0xf]
    %v338 = vld [vmem:[%s6] sm:$0x1]
    %v340 = vlaneseq
    %v341 = vshrl.u32 %v340, 7
    %v342 = vsub.s32 0, %v341
    %v343 = vrot.slane %v338, %v342
    %v361 = vunpack.c.l.b16 %v322
    %v362 = vunpack.c.l.b16 %v323
    %v363 = vunpack.c.l.b16 %v324
    %v364 = vunpack.c.l.b16 %v325
    %v365 = vunpack.c.l.b16 %v326
    %v366 = vunpack.c.l.b16 %v327
    %v367 = vunpack.c.l.b16 %v328
    %v368 = vunpack.c.l.b16 %v329
    %v369 = vunpack.c.l.b16 %v330
    %v370 = vunpack.c.l.b16 %v331
    %v371 = vunpack.c.l.b16 %v332
    %v372 = vunpack.c.l.b16 %v333
    %v373 = vunpack.c.l.b16 %v334
    %v374 = vunpack.c.l.b16 %v335
    %v375 = vunpack.c.l.b16 %v336
    %v376 = vunpack.c.l.b16 %v337
    %v377 = vpack.c.b16 %v362, %v361
    %v378 = vpack.c.b16 %v364, %v363
    %v379 = vpack.c.b16 %v366, %v365
    %v380 = vpack.c.b16 %v368, %v367
    %v381 = vpack.c.b16 %v370, %v369
    %v382 = vpack.c.b16 %v372, %v371
    %v383 = vpack.c.b16 %v374, %v373
    %v384 = vpack.c.b16 %v376, %v375
    %393 = vmatprep.subr.bf16.mxu0 0
    %394 = vmatpush1.bf16.msra.mxu0 %v377
    %395 = vmatprep.subr.bf16.mxu0 0
    %396 = vmatpush1.bf16.msra.mxu0 %v378
    %397 = vmatprep.subr.bf16.mxu0 0
    %398 = vmatpush1.bf16.msra.mxu0 %v379
    %399 = vmatprep.subr.bf16.mxu0 0
    %400 = vmatpush1.bf16.msra.mxu0 %v380
    %401 = vmatprep.subr.bf16.mxu0 0
    %402 = vmatpush1.bf16.msra.mxu0 %v381
    %403 = vmatprep.subr.bf16.mxu0 0
    %404 = vmatpush1.bf16.msra.mxu0 %v382
    %405 = vmatprep.subr.bf16.mxu0 0
    %406 = vmatpush1.bf16.msra.mxu0 %v383
    %407 = vmatprep.subr.bf16.mxu0 0
    %408 = vmatpush1.bf16.msra.mxu0 %v384
    %409 = vmatprep.subr.bf16.mxu0 0
    %410 = vmatpush1.bf16.msra.mxu0 0
    %411 = vmatprep.subr.bf16.mxu0 0
    %412 = vmatpush1.bf16.msra.mxu0 0
    %413 = vmatprep.subr.bf16.mxu0 0
    %414 = vmatpush1.bf16.msra.mxu0 0
    %415 = vmatprep.subr.bf16.mxu0 0
    %416 = vmatpush1.bf16.msra.mxu0 0
    %417 = vmatprep.subr.bf16.mxu0 0
    %418 = vmatpush1.bf16.msra.mxu0 0
    %419 = vmatprep.subr.bf16.mxu0 0
    %420 = vmatpush1.bf16.msra.mxu0 0
    %421 = vmatprep.subr.bf16.mxu0 0
    %422 = vmatpush1.bf16.msra.mxu0 0
    %423 = vmatprep.subr.bf16.mxu0 0
    %424 = vmatpush1.bf16.msra.mxu0 0
    %425 = vmatprep.mubr.bf16.mxu0 0
    %426 = vmatmul.mubr.bf16.gmra.mrb[0].mxu0 %v321
    %v427 = vpop.f32.mrb[0].mxu0
    %v428 = vadd.f32 %v343, %v427
    %v429 = vpop.f32.mrb[0].mxu0
    %v430 = vpop.f32.mrb[0].mxu0
    %v431 = vadd.f32 %v343, %v430
    %v432 = vpop.f32.mrb[0].mxu0
    %433 = vdwg.mxu0
    %434 = vst [vmem:[#allocation8] sm:$0xff] %v428
    %435 = vst [vmem:[#allocation8 + $0x8] sm:$0xff] %v431
    // Predicated region
    $region42: #{_lambda_.1} parent=1 // pred_check
      _
    $region43: #{_lambda_.1} parent=1 // pred_check_branch
      %437 = sbr.rel (0) target = $region45
    $region44: #{_lambda_.1} parent=1 // pred_region
      %s439 = ssub.s32 256, 128
      %440 = vsyncadd [#allocation4], %s439
      %s441 = sshll.u32 [#allocation8], 4
      %s442 = int_to_ptr.vmem [resolvable:$true] %s441
      %447 = dma.vmem_to_hbm [thread:$0]  %s442, 128, %s7, [#allocation4], 128, 128, 8
    $region45: #{_lambda_.1} parent=1 // pred_fallthru
      _
    // Predicated region
    $region46: #{_lambda_.1} parent=1 // pred_check
      _
    $region47: #{_lambda_.1} parent=1 // pred_check_branch
      %449 = sbr.rel (0) target = $region49
    $region48: #{_lambda_.1} parent=1 // pred_region
      %450 = dma.done [#allocation4], 256
    $region49: #{_lambda_.1} parent=1 // pred_fallthru
      _
    %451 = vsyncpa [#allocation3], 1
    %452 = vsyncpa [#allocation6], 1
    %453 = vsyncpa [#allocation4], 1

</llo_original>
